<compile_context>
chip_gen: v7x
topology: tpu7x:2x2x1
jax: 0.10.0
libtpu: 0.0.40
codegen_flags: <defaults>
</compile_context>

<pallas_src>
import functools

import jax
import jax.numpy as jnp
from jax.experimental import pallas as pl
from jax.experimental.pallas import tpu as pltpu

# TODO(synk): nb_movies is dataset-dependent in the original script; fixed here
# to a synthetic, lane-aligned 256 features.
NB_MOVIES = 256
H1 = 20   # fc1 out / fc3 out / fc4 in
H2 = 10   # fc2 out / fc3 in

TB_MAX = 2048  # preferred max batch tile (rows)

_TB_CANDIDATES = (2048, 1024, 512, 256, 128, 64, 32, 16, 8)


def _cdiv(a, b):
    return -(-a // b)


def _pick_tb(B, tb_max):
    """Pick a batch-tile size minimizing ragged-tail waste.

    Among minimal-waste candidates prefer the largest tile (fewest grid steps
    -> amortizes per-step overhead). For B <= tb_max a single full-batch tile
    (zero waste) is always a candidate; blocks equal to the full dim are legal
    even when not a multiple of 8.
    """
    if B <= 8:
        return B
    cands = [c for c in _TB_CANDIDATES if c <= tb_max]
    if B <= tb_max:
        cands.append(B)
    cands = sorted(set(cands), reverse=True)
    best, best_waste = None, None
    for c in cands:
        waste = c * _cdiv(B, c) - B  # masked rows in the final partial tile
        if best is None or waste < best_waste:
            best, best_waste = c, waste
    return best


def _sigmoid_f32(z):
    # exp -> EUP; approx reciprocal -> EUP (vrcp). Keeps activations off VALU.
    return pl.reciprocal(1.0 + jnp.exp(-z), approx=True)


def sae_kernel(x_ref,
               w1_ref, b1_ref,
               w2_ref, b2_ref,
               w3_ref, b3_ref,
               w4_ref, b4_ref,
               o_ref):
    # x arrives f32 straight from HBM; cast to bf16 in-VMEM (free VPU filler
    # under DMA slack) so MXU operands are bf16 with f32 accumulation.
    x = x_ref[...].astype(jnp.bfloat16)                                  # (TB, M)
    z1 = jnp.dot(x, w1_ref[...], preferred_element_type=jnp.float32) + b1_ref[...]
    h1 = _sigmoid_f32(z1).astype(jnp.bfloat16)                           # (TB, 20)
    z2 = jnp.dot(h1, w2_ref[...], preferred_element_type=jnp.float32) + b2_ref[...]
    h2 = _sigmoid_f32(z2).astype(jnp.bfloat16)                           # (TB, 10)
    z3 = jnp.dot(h2, w3_ref[...], preferred_element_type=jnp.float32) + b3_ref[...]
    h3 = _sigmoid_f32(z3).astype(jnp.bfloat16)                           # (TB, 20)
    out = jnp.dot(h3, w4_ref[...], preferred_element_type=jnp.float32) + b4_ref[...]
    o_ref[...] = out.astype(o_ref.dtype)                                 # (TB, M)


@functools.partial(jax.jit, static_argnames=("tb_max", "out_dtype"))
def sae_forward(x, params, *, tb_max=TB_MAX, out_dtype=jnp.bfloat16):
    """x: (B, NB_MOVIES) float32. Returns (B, NB_MOVIES) in out_dtype."""
    B, M = x.shape
    assert M == NB_MOVIES

    TB = _pick_tb(B, tb_max)
    grid = (_cdiv(B, TB),)   # Pallas masks the partial last block (no pad)

    # Weights to bf16 (tiny, one-time); biases stay f32.
    w1 = params["w1"].astype(jnp.bfloat16)
    w2 = params["w2"].astype(jnp.bfloat16)
    w3 = params["w3"].astype(jnp.bfloat16)
    w4 = params["w4"].astype(jnp.bfloat16)
    b1, b2, b3, b4 = params["b1"], params["b2"], params["b3"], params["b4"]

    def tiled(shape):      # batch-tiled arrays (x / out)
        return pl.BlockSpec(shape, lambda i: (i, 0))

    def resident(shape):   # weights/biases: same block every step -> VMEM-resident
        return pl.BlockSpec(shape, lambda i: (0, 0))

    in_specs = [
        tiled((TB, M)),                                  # x, f32
        resident((M, H1)), resident((1, H1)),
        resident((H1, H2)), resident((1, H2)),
        resident((H2, H1)), resident((1, H1)),
        resident((H1, M)), resident((1, M)),
    ]
    out_specs = tiled((TB, M))

    out_bytes = jnp.dtype(out_dtype).itemsize
    flops = 2 * B * (M * H1 + H1 * H2 + H2 * H1 + H1 * M)
    transcendentals = B * (H1 + H2 + H1)
    weight_bytes = 2 * (M * H1 + H1 * H2 + H2 * H1 + H1 * M) + 4 * (H1 + H2 + H1 + M)
    bytes_accessed = B * M * 4 + B * M * out_bytes + weight_bytes

    return pl.pallas_call(
        sae_kernel,
        out_shape=jax.ShapeDtypeStruct((B, M), out_dtype),
        grid=grid,
        in_specs=in_specs,
        out_specs=out_specs,
        compiler_params=pltpu.CompilerParams(
            dimension_semantics=("parallel",),     # v7x: shard batch over 2 TCs
            vmem_limit_bytes=32 * 1024 * 1024,
        ),
        cost_estimate=pl.CostEstimate(
            flops=flops,
            transcendentals=transcendentals,
            bytes_accessed=bytes_accessed,
        ),
    )(x, w1, b1, w2, b2, w3, b3, w4, b4)


def init_params(key):
    """PyTorch nn.Linear default init (U[-1/sqrt(in), 1/sqrt(in)]).

    Weights pre-transposed to (in_features, out_features); biases (1, out).
    """
    def linear(key, fan_in, fan_out):
        kw, kb = jax.random.split(key)
        bound = 1.0 / jnp.sqrt(fan_in)
        w = jax.random.uniform(kw, (fan_in, fan_out), jnp.float32, -bound, bound)
        b = jax.random.uniform(kb, (1, fan_out), jnp.float32, -bound, bound)
        return w, b

    k1, k2, k3, k4 = jax.random.split(key, 4)
    w1, b1 = linear(k1, NB_MOVIES, H1)
    w2, b2 = linear(k2, H1, H2)
    w3, b3 = linear(k3, H2, H1)
    w4, b4 = linear(k4, H1, NB_MOVIES)
    return dict(w1=w1, b1=b1, w2=w2, b2=b2, w3=w3, b3=b3, w4=w4, b4=b4)


def sae_reference(x, p):
    """Precision-matched reference: bf16 matmul operands, f32 accumulation."""
    bf = jnp.bfloat16

    def sig(z):
        return 1.0 / (1.0 + jnp.exp(-z))

    h1 = sig(jnp.dot(x.astype(bf), p["w1"].astype(bf),
                     preferred_element_type=jnp.float32) + p["b1"])
    h2 = sig(jnp.dot(h1.astype(bf), p["w2"].astype(bf),
                     preferred_element_type=jnp.float32) + p["b2"])
    h3 = sig(jnp.dot(h2.astype(bf), p["w3"].astype(bf),
                     preferred_element_type=jnp.float32) + p["b3"])
    return (jnp.dot(h3.astype(bf), p["w4"].astype(bf),
                    preferred_element_type=jnp.float32) + p["b4"])


if __name__ == "__main__":
    key = jax.random.PRNGKey(0)
    k_param, k_x, k_x2 = jax.random.split(key, 3)
    params = init_params(k_param)

    # Small single-tile test, f32 output path.
    B = 8
    x = jax.random.uniform(k_x, (B, NB_MOVIES), jnp.float32, 0.0, 5.0)
    out = sae_forward(x, params, out_dtype=jnp.float32)
    jax.block_until_ready(out)
    ref = sae_reference(x, params)
    assert out.shape == (B, NB_MOVIES) and out.dtype == jnp.float32
    assert jnp.allclose(out, ref, atol=5e-3, rtol=5e-3), "mismatch vs reference (small/f32)"

    # Multi-tile ragged-batch test (exercises partial last block), bf16 output.
    B2 = 2500
    x2 = jax.random.uniform(k_x2, (B2, NB_MOVIES), jnp.float32, 0.0, 5.0)
    out2 = sae_forward(x2, params)   # default bf16 output
    jax.block_until_ready(out2)
    ref2 = sae_reference(x2, params)
    assert out2.shape == (B2, NB_MOVIES) and out2.dtype == jnp.bfloat16
    o2 = out2.astype(jnp.float32)
    assert jnp.all(jnp.isfinite(o2))
    assert jnp.allclose(o2, ref2, atol=3e-2, rtol=3e-2), "mismatch vs reference (tiled/bf16)"

    print("KERNEL_OK")
</pallas_src>

<mosaic_0001>
module attributes {stable_mosaic.version = 11 : i64} {
  func.func @sae_kernel(%arg0: i32, %arg1: memref<8x256xf32, #tpu.memory_space<vmem>>, %arg2: memref<256x20xbf16, #tpu.memory_space<vmem>>, %arg3: memref<1x20xf32, #tpu.memory_space<vmem>>, %arg4: memref<20x10xbf16, #tpu.memory_space<vmem>>, %arg5: memref<1x10xf32, #tpu.memory_space<vmem>>, %arg6: memref<10x20xbf16, #tpu.memory_space<vmem>>, %arg7: memref<1x20xf32, #tpu.memory_space<vmem>>, %arg8: memref<20x256xbf16, #tpu.memory_space<vmem>>, %arg9: memref<1x256xf32, #tpu.memory_space<vmem>>, %arg10: memref<8x256xf32, #tpu.memory_space<vmem>>) attributes {dimension_semantics = [#tpu.dimension_semantics<parallel>], iteration_bounds = array<i64: 1>, scalar_prefetch = 0 : i64, scratch_operands = 0 : i64, tpu.core_type = #tpu.core_type<tc>, window_params = [{transform_indices = @transform_0, window_bounds = array<i64: 8, 256>}, {pipeline_mode = #tpu.pipeline_mode<synchronous>, transform_indices = @transform_1, window_bounds = array<i64: 256, 20>}, {pipeline_mode = #tpu.pipeline_mode<synchronous>, transform_indices = @transform_2, window_bounds = array<i64: 1, 20>}, {pipeline_mode = #tpu.pipeline_mode<synchronous>, transform_indices = @transform_3, window_bounds = array<i64: 20, 10>}, {pipeline_mode = #tpu.pipeline_mode<synchronous>, transform_indices = @transform_4, window_bounds = array<i64: 1, 10>}, {pipeline_mode = #tpu.pipeline_mode<synchronous>, transform_indices = @transform_5, window_bounds = array<i64: 10, 20>}, {pipeline_mode = #tpu.pipeline_mode<synchronous>, transform_indices = @transform_6, window_bounds = array<i64: 1, 20>}, {pipeline_mode = #tpu.pipeline_mode<synchronous>, transform_indices = @transform_7, window_bounds = array<i64: 20, 256>}, {pipeline_mode = #tpu.pipeline_mode<synchronous>, transform_indices = @transform_8, window_bounds = array<i64: 1, 256>}, {transform_indices = @transform_9, window_bounds = array<i64: 8, 256>}]} {
    %c0 = arith.constant 0 : index
    %c0_0 = arith.constant 0 : index
    %0 = vector.load %arg1[%c0, %c0_0] : memref<8x256xf32, #tpu.memory_space<vmem>>, vector<8x256xf32>
    %1 = arith.truncf %0 : vector<8x256xf32> to vector<8x256xbf16>
    %c0_1 = arith.constant 0 : index
    %c0_2 = arith.constant 0 : index
    %2 = vector.load %arg2[%c0_1, %c0_2] : memref<256x20xbf16, #tpu.memory_space<vmem>>, vector<256x20xbf16>
    %cst = arith.constant dense<0.000000e+00> : vector<8x20xf32>
    %3 = tpu.matmul %1, %2, %cst {dimension_numbers = #tpu.dot_dimension_numbers<[1], [0], [0], [1], [0, 0, 1, 1], [], []>} : vector<8x256xbf16>, vector<256x20xbf16>, vector<8x20xf32> -> vector<8x20xf32>
    %c0_3 = arith.constant 0 : index
    %c0_4 = arith.constant 0 : index
    %4 = vector.load %arg3[%c0_3, %c0_4] : memref<1x20xf32, #tpu.memory_space<vmem>>, vector<1x20xf32>
    %5 = vector.broadcast %4 : vector<1x20xf32> to vector<8x20xf32>
    %6 = arith.addf %3, %5 : vector<8x20xf32>
    %cst_5 = arith.constant 0.000000e+00 : f32
    %7 = vector.broadcast %cst_5 : f32 to vector<8x20xf32>
    %8 = arith.subf %7, %6 : vector<8x20xf32>
    %9 = math.exp %8 : vector<8x20xf32>
    %cst_6 = arith.constant 1.000000e+00 : f32
    %10 = vector.broadcast %cst_6 : f32 to vector<8x20xf32>
    %11 = arith.addf %10, %9 : vector<8x20xf32>
    %12 = tpu.reciprocal %11 {approx = true} : vector<8x20xf32> -> vector<8x20xf32>
    %13 = arith.truncf %12 : vector<8x20xf32> to vector<8x20xbf16>
    %c0_7 = arith.constant 0 : index
    %c0_8 = arith.constant 0 : index
    %14 = vector.load %arg4[%c0_7, %c0_8] : memref<20x10xbf16, #tpu.memory_space<vmem>>, vector<20x10xbf16>
    %cst_9 = arith.constant dense<0.000000e+00> : vector<8x10xf32>
    %15 = tpu.matmul %13, %14, %cst_9 {dimension_numbers = #tpu.dot_dimension_numbers<[1], [0], [0], [1], [0, 0, 1, 1], [], []>} : vector<8x20xbf16>, vector<20x10xbf16>, vector<8x10xf32> -> vector<8x10xf32>
    %c0_10 = arith.constant 0 : index
    %c0_11 = arith.constant 0 : index
    %16 = vector.load %arg5[%c0_10, %c0_11] : memref<1x10xf32, #tpu.memory_space<vmem>>, vector<1x10xf32>
    %17 = vector.broadcast %16 : vector<1x10xf32> to vector<8x10xf32>
    %18 = arith.addf %15, %17 : vector<8x10xf32>
    %cst_12 = arith.constant 0.000000e+00 : f32
    %19 = vector.broadcast %cst_12 : f32 to vector<8x10xf32>
    %20 = arith.subf %19, %18 : vector<8x10xf32>
    %21 = math.exp %20 : vector<8x10xf32>
    %cst_13 = arith.constant 1.000000e+00 : f32
    %22 = vector.broadcast %cst_13 : f32 to vector<8x10xf32>
    %23 = arith.addf %22, %21 : vector<8x10xf32>
    %24 = tpu.reciprocal %23 {approx = true} : vector<8x10xf32> -> vector<8x10xf32>
    %25 = arith.truncf %24 : vector<8x10xf32> to vector<8x10xbf16>
    %c0_14 = arith.constant 0 : index
    %c0_15 = arith.constant 0 : index
    %26 = vector.load %arg6[%c0_14, %c0_15] : memref<10x20xbf16, #tpu.memory_space<vmem>>, vector<10x20xbf16>
    %cst_16 = arith.constant dense<0.000000e+00> : vector<8x20xf32>
    %27 = tpu.matmul %25, %26, %cst_16 {dimension_numbers = #tpu.dot_dimension_numbers<[1], [0], [0], [1], [0, 0, 1, 1], [], []>} : vector<8x10xbf16>, vector<10x20xbf16>, vector<8x20xf32> -> vector<8x20xf32>
    %c0_17 = arith.constant 0 : index
    %c0_18 = arith.constant 0 : index
    %28 = vector.load %arg7[%c0_17, %c0_18] : memref<1x20xf32, #tpu.memory_space<vmem>>, vector<1x20xf32>
    %29 = vector.broadcast %28 : vector<1x20xf32> to vector<8x20xf32>
    %30 = arith.addf %27, %29 : vector<8x20xf32>
    %cst_19 = arith.constant 0.000000e+00 : f32
    %31 = vector.broadcast %cst_19 : f32 to vector<8x20xf32>
    %32 = arith.subf %31, %30 : vector<8x20xf32>
    %33 = math.exp %32 : vector<8x20xf32>
    %cst_20 = arith.constant 1.000000e+00 : f32
    %34 = vector.broadcast %cst_20 : f32 to vector<8x20xf32>
    %35 = arith.addf %34, %33 : vector<8x20xf32>
    %36 = tpu.reciprocal %35 {approx = true} : vector<8x20xf32> -> vector<8x20xf32>
    %37 = arith.truncf %36 : vector<8x20xf32> to vector<8x20xbf16>
    %c0_21 = arith.constant 0 : index
    %c0_22 = arith.constant 0 : index
    %38 = vector.load %arg8[%c0_21, %c0_22] : memref<20x256xbf16, #tpu.memory_space<vmem>>, vector<20x256xbf16>
    %cst_23 = arith.constant dense<0.000000e+00> : vector<8x256xf32>
    %39 = tpu.matmul %37, %38, %cst_23 {dimension_numbers = #tpu.dot_dimension_numbers<[1], [0], [0], [1], [0, 0, 1, 1], [], []>} : vector<8x20xbf16>, vector<20x256xbf16>, vector<8x256xf32> -> vector<8x256xf32>
    %c0_24 = arith.constant 0 : index
    %c0_25 = arith.constant 0 : index
    %40 = vector.load %arg9[%c0_24, %c0_25] : memref<1x256xf32, #tpu.memory_space<vmem>>, vector<1x256xf32>
    %41 = vector.broadcast %40 : vector<1x256xf32> to vector<8x256xf32>
    %42 = arith.addf %39, %41 : vector<8x256xf32>
    %c0_26 = arith.constant 0 : index
    %c0_27 = arith.constant 0 : index
    %43 = vector.load %arg10[%c0_26, %c0_27] : memref<8x256xf32, #tpu.memory_space<vmem>>, vector<8x256xf32>
    tpu.vector_store %arg10[%c0_26, %c0_27], %42 {strides = array<i32>} : memref<8x256xf32, #tpu.memory_space<vmem>>, vector<8x256xf32>,
    return
  }
  func.func @transform_0(%arg0: i32) -> (i32, i32) {
    %c0_i32 = arith.constant 0 : i32
    %c0_i32_0 = arith.constant 0 : i32
    return %arg0, %c0_i32 : i32, i32
  }
  func.func @transform_1(%arg0: i32) -> (i32, i32) {
    %c0_i32 = arith.constant 0 : i32
    %c0_i32_0 = arith.constant 0 : i32
    %c0_i32_1 = arith.constant 0 : i32
    return %c0_i32, %c0_i32_0 : i32, i32
  }
  func.func @transform_2(%arg0: i32) -> (i32, i32) {
    %c0_i32 = arith.constant 0 : i32
    %c0_i32_0 = arith.constant 0 : i32
    %c0_i32_1 = arith.constant 0 : i32
    return %c0_i32, %c0_i32_0 : i32, i32
  }
  func.func @transform_3(%arg0: i32) -> (i32, i32) {
    %c0_i32 = arith.constant 0 : i32
    %c0_i32_0 = arith.constant 0 : i32
    %c0_i32_1 = arith.constant 0 : i32
    return %c0_i32, %c0_i32_0 : i32, i32
  }
  func.func @transform_4(%arg0: i32) -> (i32, i32) {
    %c0_i32 = arith.constant 0 : i32
    %c0_i32_0 = arith.constant 0 : i32
    %c0_i32_1 = arith.constant 0 : i32
    return %c0_i32, %c0_i32_0 : i32, i32
  }
  func.func @transform_5(%arg0: i32) -> (i32, i32) {
    %c0_i32 = arith.constant 0 : i32
    %c0_i32_0 = arith.constant 0 : i32
    %c0_i32_1 = arith.constant 0 : i32
    return %c0_i32, %c0_i32_0 : i32, i32
  }
  func.func @transform_6(%arg0: i32) -> (i32, i32) {
    %c0_i32 = arith.constant 0 : i32
    %c0_i32_0 = arith.constant 0 : i32
    %c0_i32_1 = arith.constant 0 : i32
    return %c0_i32, %c0_i32_0 : i32, i32
  }
  func.func @transform_7(%arg0: i32) -> (i32, i32) {
    %c0_i32 = arith.constant 0 : i32
    %c0_i32_0 = arith.constant 0 : i32
    %c0_i32_1 = arith.constant 0 : i32
    return %c0_i32, %c0_i32_0 : i32, i32
  }
  func.func @transform_8(%arg0: i32) -> (i32, i32) {
    %c0_i32 = arith.constant 0 : i32
    %c0_i32_0 = arith.constant 0 : i32
    %c0_i32_1 = arith.constant 0 : i32
    return %c0_i32, %c0_i32_0 : i32, i32
  }
  func.func @transform_9(%arg0: i32) -> (i32, i32) {
    %c0_i32 = arith.constant 0 : i32
    %c0_i32_0 = arith.constant 0 : i32
    return %arg0, %c0_i32 : i32, i32
  }
}

</mosaic_0001>

<llo_original>
// kernel: sae_forward.1
$region0: #{sae_forward.1}
  #allocation0 [shape = 'u32[]', space=smem, size = 0x4, offset = 0x4, fixed_abs, tag = 'smem constant byte address 0x4 - core index']
  #allocation1 [shape = 'u32[144,128]{1,0:T(1,128)}', space=vmem, size = 0x12000, scoped, tag = 'internal scratch']
  %s0 = inlined_call_operand.vmem [shape: f32[8,256], index: 0, kind: input, shape index: {}]
  %s1 = inlined_call_operand.vmem [shape: bf16[256,20], index: 1, kind: input, shape index: {}]
  %s2 = inlined_call_operand.vmem [shape: f32[1,20], index: 2, kind: input, shape index: {}]
  %s3 = inlined_call_operand.vmem [shape: bf16[20,10], index: 3, kind: input, shape index: {}]
  %s4 = inlined_call_operand.vmem [shape: f32[1,10], index: 4, kind: input, shape index: {}]
  %s5 = inlined_call_operand.vmem [shape: bf16[10,20], index: 5, kind: input, shape index: {}]
  %s6 = inlined_call_operand.vmem [shape: f32[1,20], index: 6, kind: input, shape index: {}]
  %s7 = inlined_call_operand.vmem [shape: bf16[20,256], index: 7, kind: input, shape index: {}]
  %s8 = inlined_call_operand.vmem [shape: f32[1,256], index: 8, kind: input, shape index: {}]
  %s9 = inlined_call_operand.hbm [shape: f32[8,256], index: 9, kind: output, shape index: {}]
  %s10 = sld [smem:[#allocation0]]
  $region46: #{sae_forward.1} parent=0
    _
  %s12 = ssub.s32 1, %s10
  %s13 = scalar_select 0, %s12, %s10
  $region1: #{sae_forward.1} parent=0
    #allocation2 [shape = 'u8[8192]{0}', space=vmem, size = 0x2000, scoped, tag = 'output window, operand 0, single buffered']
    #allocation3 [shape = 's32[1]{0}', space=sflag, size = 0x4, scoped, tag = 'scoped memory for sae_forward.1']
    %14 = vsyncpa [#allocation3], 0
    // Predicated region
    $region2: #{sae_forward.1} parent=1 // pred_check
      _
    $region3: #{sae_forward.1} parent=1 // pred_check_branch
      %16 = sbr.rel (0) target = $region5
    $region4: #{sae_forward.1} parent=1 // pred_region
      _
    $region5: #{sae_forward.1} parent=1 // pred_fallthru
      _
    // Predicated region
    $region6: #{sae_forward.1} parent=1 // pred_check
      _
    $region7: #{sae_forward.1} parent=1 // pred_check_branch
      %18 = sbr.rel (0) target = $region9
    $region8: #{sae_forward.1} parent=1 // pred_region
      _
    $region9: #{sae_forward.1} parent=1 // pred_fallthru
      _
    // Predicated region
    $region10: #{sae_forward.1} parent=1 // pred_check
      _
    $region11: #{sae_forward.1} parent=1 // pred_check_branch
      %20 = sbr.rel (0) target = $region13
    $region12: #{sae_forward.1} parent=1 // pred_region
      _
    $region13: #{sae_forward.1} parent=1 // pred_fallthru
      _
    // Predicated region
    $region14: #{sae_forward.1} parent=1 // pred_check
      _
    $region15: #{sae_forward.1} parent=1 // pred_check_branch
      %22 = sbr.rel (0) target = $region17
    $region16: #{sae_forward.1} parent=1 // pred_region
      _
    $region17: #{sae_forward.1} parent=1 // pred_fallthru
      _
    // Predicated region
    $region18: #{sae_forward.1} parent=1 // pred_check
      _
    $region19: #{sae_forward.1} parent=1 // pred_check_branch
      %24 = sbr.rel (0) target = $region21
    $region20: #{sae_forward.1} parent=1 // pred_region
      _
    $region21: #{sae_forward.1} parent=1 // pred_fallthru
      _
    // Predicated region
    $region22: #{sae_forward.1} parent=1 // pred_check
      _
    $region23: #{sae_forward.1} parent=1 // pred_check_branch
      %26 = sbr.rel (0) target = $region25
    $region24: #{sae_forward.1} parent=1 // pred_region
      _
    $region25: #{sae_forward.1} parent=1 // pred_fallthru
      _
    // Predicated region
    $region26: #{sae_forward.1} parent=1 // pred_check
      _
    $region27: #{sae_forward.1} parent=1 // pred_check_branch
      %28 = sbr.rel (0) target = $region29
    $region28: #{sae_forward.1} parent=1 // pred_region
      _
    $region29: #{sae_forward.1} parent=1 // pred_fallthru
      _
    // Predicated region
    $region30: #{sae_forward.1} parent=1 // pred_check
      _
    $region31: #{sae_forward.1} parent=1 // pred_check_branch
      %30 = sbr.rel (0) target = $region33
    $region32: #{sae_forward.1} parent=1 // pred_region
      _
    $region33: #{sae_forward.1} parent=1 // pred_fallthru
      _
    // Predicated region
    $region34: #{sae_forward.1} parent=1 // pred_check
      _
    $region35: #{sae_forward.1} parent=1 // pred_check_branch
      %32 = sbr.rel (0) target = $region37
    $region36: #{sae_forward.1} parent=1 // pred_region
      _
    $region37: #{sae_forward.1} parent=1 // pred_fallthru
      _
    %v34 = vld [vmem:[%s0] sm:$0xff]
    %v35 = vld [vmem:[%s0 + $0x8] sm:$0xff]
    %v36 = vpack.c.bf16 %v34, %v34
    %v37 = vpack.c.bf16 %v35, %v35
    %v38 = vld [vmem:[%s1] sm:$0xf]
    %v39 = vld [vmem:[%s1 + $0x4] sm:$0xf]
    %v40 = vld [vmem:[%s1 + $0x8] sm:$0xf]
    %v41 = vld [vmem:[%s1 + $0xc] sm:$0xf]
    %v42 = vld [vmem:[%s1 + $0x10] sm:$0xf]
    %v43 = vld [vmem:[%s1 + $0x14] sm:$0xf]
    %v44 = vld [vmem:[%s1 + $0x18] sm:$0xf]
    %v45 = vld [vmem:[%s1 + $0x1c] sm:$0xf]
    %v46 = vld [vmem:[%s1 + $0x20] sm:$0xf]
    %v47 = vld [vmem:[%s1 + $0x24] sm:$0xf]
    %v48 = vld [vmem:[%s1 + $0x28] sm:$0xf]
    %v49 = vld [vmem:[%s1 + $0x2c] sm:$0xf]
    %v50 = vld [vmem:[%s1 + $0x30] sm:$0xf]
    %v51 = vld [vmem:[%s1 + $0x34] sm:$0xf]
    %v52 = vld [vmem:[%s1 + $0x38] sm:$0xf]
    %v53 = vld [vmem:[%s1 + $0x3c] sm:$0xf]
    %v54 = vld [vmem:[%s1 + $0x40] sm:$0xf]
    %v55 = vld [vmem:[%s1 + $0x44] sm:$0xf]
    %v56 = vld [vmem:[%s1 + $0x48] sm:$0xf]
    %v57 = vld [vmem:[%s1 + $0x4c] sm:$0xf]
    %v58 = vld [vmem:[%s1 + $0x50] sm:$0xf]
    %v59 = vld [vmem:[%s1 + $0x54] sm:$0xf]
    %v60 = vld [vmem:[%s1 + $0x58] sm:$0xf]
    %v61 = vld [vmem:[%s1 + $0x5c] sm:$0xf]
    %v62 = vld [vmem:[%s1 + $0x60] sm:$0xf]
    %v63 = vld [vmem:[%s1 + $0x64] sm:$0xf]
    %v64 = vld [vmem:[%s1 + $0x68] sm:$0xf]
    %v65 = vld [vmem:[%s1 + $0x6c] sm:$0xf]
    %v66 = vld [vmem:[%s1 + $0x70] sm:$0xf]
    %v67 = vld [vmem:[%s1 + $0x74] sm:$0xf]
    %v68 = vld [vmem:[%s1 + $0x78] sm:$0xf]
    %v69 = vld [vmem:[%s1 + $0x7c] sm:$0xf]
    %v70 = vld [vmem:[%s2] sm:$0x1]
    %v72 = vlaneseq
    %v73 = vshrl.u32 %v72, 7
    %v74 = vsub.s32 0, %v73
    %v75 = vrot.slane %v70, %v74
    %v109 = vunpack.c.l.b16 %v38
    %v110 = vunpack.c.l.b16 %v39
    %v111 = vunpack.c.l.b16 %v40
    %v112 = vunpack.c.l.b16 %v41
    %v113 = vunpack.c.l.b16 %v42
    %v114 = vunpack.c.l.b16 %v43
    %v115 = vunpack.c.l.b16 %v44
    %v116 = vunpack.c.l.b16 %v45
    %v117 = vunpack.c.l.b16 %v46
    %v118 = vunpack.c.l.b16 %v47
    %v119 = vunpack.c.l.b16 %v48
    %v120 = vunpack.c.l.b16 %v49
    %v121 = vunpack.c.l.b16 %v50
    %v122 = vunpack.c.l.b16 %v51
    %v123 = vunpack.c.l.b16 %v52
    %v124 = vunpack.c.l.b16 %v53
    %v125 = vunpack.c.l.b16 %v54
    %v126 = vunpack.c.l.b16 %v55
    %v127 = vunpack.c.l.b16 %v56
    %v128 = vunpack.c.l.b16 %v57
    %v129 = vunpack.c.l.b16 %v58
    %v130 = vunpack.c.l.b16 %v59
    %v131 = vunpack.c.l.b16 %v60
    %v132 = vunpack.c.l.b16 %v61
    %v133 = vunpack.c.l.b16 %v62
    %v134 = vunpack.c.l.b16 %v63
    %v135 = vunpack.c.l.b16 %v64
    %v136 = vunpack.c.l.b16 %v65
    %v137 = vunpack.c.l.b16 %v66
    %v138 = vunpack.c.l.b16 %v67
    %v139 = vunpack.c.l.b16 %v68
    %v140 = vunpack.c.l.b16 %v69
    %v141 = vpack.c.b16 %v110, %v109
    %v142 = vpack.c.b16 %v112, %v111
    %v143 = vpack.c.b16 %v114, %v113
    %v144 = vpack.c.b16 %v116, %v115
    %v145 = vpack.c.b16 %v118, %v117
    %v146 = vpack.c.b16 %v120, %v119
    %v147 = vpack.c.b16 %v122, %v121
    %v148 = vpack.c.b16 %v124, %v123
    %v149 = vpack.c.b16 %v126, %v125
    %v150 = vpack.c.b16 %v128, %v127
    %v151 = vpack.c.b16 %v130, %v129
    %v152 = vpack.c.b16 %v132, %v131
    %v153 = vpack.c.b16 %v134, %v133
    %v154 = vpack.c.b16 %v136, %v135
    %v155 = vpack.c.b16 %v138, %v137
    %v156 = vpack.c.b16 %v140, %v139
    %173 = vmatprep.subr.bf16.mxu0 0
    %174 = vmatpush1.bf16.msra.mxu0 %v141
    %175 = vmatprep.subr.bf16.mxu0 0
    %176 = vmatpush1.bf16.msra.mxu0 %v142
    %177 = vmatprep.subr.bf16.mxu0 0
    %178 = vmatpush1.bf16.msra.mxu0 %v143
    %179 = vmatprep.subr.bf16.mxu0 0
    %180 = vmatpush1.bf16.msra.mxu0 %v144
    %181 = vmatprep.subr.bf16.mxu0 0
    %182 = vmatpush1.bf16.msra.mxu0 %v145
    %183 = vmatprep.subr.bf16.mxu0 0
    %184 = vmatpush1.bf16.msra.mxu0 %v146
    %185 = vmatprep.subr.bf16.mxu0 0
    %186 = vmatpush1.bf16.msra.mxu0 %v147
    %187 = vmatprep.subr.bf16.mxu0 0
    %188 = vmatpush1.bf16.msra.mxu0 %v148
    %189 = vmatprep.subr.bf16.mxu0 0
    %190 = vmatpush1.bf16.msra.mxu0 %v149
    %191 = vmatprep.subr.bf16.mxu0 0
    %192 = vmatpush1.bf16.msra.mxu0 %v150
    %193 = vmatprep.subr.bf16.mxu0 0
    %194 = vmatpush1.bf16.msra.mxu0 %v151
    %195 = vmatprep.subr.bf16.mxu0 0
    %196 = vmatpush1.bf16.msra.mxu0 %v152
    %197 = vmatprep.subr.bf16.mxu0 0
    %198 = vmatpush1.bf16.msra.mxu0 %v153
    %199 = vmatprep.subr.bf16.mxu0 0
    %200 = vmatpush1.bf16.msra.mxu0 %v154
    %201 = vmatprep.subr.bf16.mxu0 0
    %202 = vmatpush1.bf16.msra.mxu0 %v155
    %203 = vmatprep.subr.bf16.mxu0 0
    %204 = vmatpush1.bf16.msra.mxu0 %v156
    %205 = vmatprep.mubr.bf16.mxu0 %v37
    %206 = vmatmul.mubr.bf16.gmra.mrb[0].mxu0 %v36
    %v207 = vpop.f32.mrb[0].mxu0
    %v208 = vadd.f32 %v75, %v207
    %v209 = vpop.f32.mrb[0].mxu0
    %v210 = vpop.f32.mrb[0].mxu0
    %v211 = vpop.f32.mrb[0].mxu0
    %212 = vdwg.mxu0
    %v213 = vsub.f32 0.0, %v208
    %v214 = vmul.f32 %v213, 1.442695
    %v215 = vpow.pop %v214
    %v216 = vadd.f32 %v215, 1.0
    %v217 = vrcp.pop %v216
    %v218 = vpack.c.bf16 %v217, %v217
    %v219 = vld [vmem:[%s3] sm:$0xf]
    %v220 = vld [vmem:[%s3 + $0x4] sm:$0xf]
    %v221 = vld [vmem:[%s3 + $0x8] sm:$0x3]
    %v222 = vld [vmem:[%s4] sm:$0x1]
    %v224 = vlaneseq
    %v225 = vshrl.u32 %v224, 7
    %v226 = vsub.s32 0, %v225
    %v227 = vrot.slane %v222, %v226
    %v232 = vunpack.c.l.b16 %v219
    %v233 = vunpack.c.l.b16 %v220
    %v234 = vunpack.c.l.b16 %v221
    %v235 = vpack.c.b16 %v233, %v232
    %v236 = vpack.c.b16 %v234, %v234
    %vm238 = vcmask 162816
    %v240 = vsel %vm238, %v218, 0
    %vm242 = vcmask 1041408
    %v244 = vsel %vm242, %v236, 0
    %246 = vmatprep.subr.bf16.mxu0 0
    %247 = vmatpush1.bf16.msra.mxu0 %v235
    %248 = vmatprep.subr.bf16.mxu0 0
    %249 = vmatpush1.bf16.msra.mxu0 %v244
    %250 = vmatprep.subr.bf16.mxu0 0
    %251 = vmatpush1.bf16.msra.mxu0 0
    %252 = vmatprep.subr.bf16.mxu0 0
    %253 = vmatpush1.bf16.msra.mxu0 0
    %254 = vmatprep.subr.bf16.mxu0 0
    %255 = vmatpush1.bf16.msra.mxu0 0
    %256 = vmatprep.subr.bf16.mxu0 0
    %257 = vmatpush1.bf16.msra.mxu0 0
    %258 = vmatprep.subr.bf16.mxu0 0
    %259 = vmatpush1.bf16.msra.mxu0 0
    %260 = vmatprep.subr.bf16.mxu0 0
    %261 = vmatpush1.bf16.msra.mxu0 0
    %262 = vmatprep.subr.bf16.mxu0 0
    %263 = vmatpush1.bf16.msra.mxu0 0
    %264 = vmatprep.subr.bf16.mxu0 0
    %265 = vmatpush1.bf16.msra.mxu0 0
    %266 = vmatprep.subr.bf16.mxu0 0
    %267 = vmatpush1.bf16.msra.mxu0 0
    %268 = vmatprep.subr.bf16.mxu0 0
    %269 = vmatpush1.bf16.msra.mxu0 0
    %270 = vmatprep.subr.bf16.mxu0 0
    %271 = vmatpush1.bf16.msra.mxu0 0
    %272 = vmatprep.subr.bf16.mxu0 0
    %273 = vmatpush1.bf16.msra.mxu0 0
    %274 = vmatprep.subr.bf16.mxu0 0
    %275 = vmatpush1.bf16.msra.mxu0 0
    %276 = vmatprep.subr.bf16.mxu0 0
    %277 = vmatpush1.bf16.msra.mxu0 0
    %278 = vmatprep.mubr.bf16.mxu0 0
    %279 = vmatmul.mubr.bf16.gmra.mrb[0].mxu0 %v240
    %v280 = vpop.f32.mrb[0].mxu0
    %v281 = vadd.f32 %v227, %v280
    %v282 = vpop.f32.mrb[0].mxu0
    %v283 = vpop.f32.mrb[0].mxu0
    %v284 = vpop.f32.mrb[0].mxu0
    %285 = vdwg.mxu0
    %v286 = vsub.f32 0.0, %v281
    %v287 = vmul.f32 %v286, 1.442695
    %v288 = vpow.pop %v287
    %v289 = vadd.f32 %v288, 1.0
    %v290 = vrcp.pop %v289
    %v291 = vpack.c.bf16 %v290, %v290
    %v292 = vld [vmem:[%s5] sm:$0xf]
    %v293 = vld [vmem:[%s5 + $0x4] sm:$0x1]
    %v294 = vld [vmem:[%s6] sm:$0x1]
    %v296 = vlaneseq
    %v297 = vshrl.u32 %v296, 7
    %v298 = vsub.s32 0, %v297
    %v299 = vrot.slane %v294, %v298
    %v303 = vunpack.c.l.b16 %v292
    %v304 = vunpack.c.l.b16 %v293
    %v305 = vpack.c.b16 %v304, %v303
    %vm306 = vcmask 80896
    %v308 = vsel %vm306, %v291, 0
    %vm310 = vcmask 1044480
    %v312 = vsel %vm310, %v305, 0
    %314 = vmatprep.subr.bf16.mxu0 0
    %315 = vmatpush1.bf16.msra.mxu0 %v312
    %316 = vmatprep.subr.bf16.mxu0 0
    %317 = vmatpush1.bf16.msra.mxu0 0
    %318 = vmatprep.subr.bf16.mxu0 0
    %319 = vmatpush1.bf16.msra.mxu0 0
    %320 = vmatprep.subr.bf16.mxu0 0
    %321 = vmatpush1.bf16.msra.mxu0 0
    %322 = vmatprep.subr.bf16.mxu0 0
    %323 = vmatpush1.bf16.msra.mxu0 0
    %324 = vmatprep.subr.bf16.mxu0 0
    %325 = vmatpush1.bf16.msra.mxu0 0
    %326 = vmatprep.subr.bf16.mxu0 0
    %327 = vmatpush1.bf16.msra.mxu0 0
    %328 = vmatprep.subr.bf16.mxu0 0
    %329 = vmatpush1.bf16.msra.mxu0 0
    %330 = vmatprep.subr.bf16.mxu0 0
    %331 = vmatpush1.bf16.msra.mxu0 0
    %332 = vmatprep.subr.bf16.mxu0 0
    %333 = vmatpush1.bf16.msra.mxu0 0
    %334 = vmatprep.subr.bf16.mxu0 0
    %335 = vmatpush1.bf16.msra.mxu0 0
    %336 = vmatprep.subr.bf16.mxu0 0
    %337 = vmatpush1.bf16.msra.mxu0 0
    %338 = vmatprep.subr.bf16.mxu0 0
    %339 = vmatpush1.bf16.msra.mxu0 0
    %340 = vmatprep.subr.bf16.mxu0 0
    %341 = vmatpush1.bf16.msra.mxu0 0
    %342 = vmatprep.subr.bf16.mxu0 0
    %343 = vmatpush1.bf16.msra.mxu0 0
    %344 = vmatprep.subr.bf16.mxu0 0
    %345 = vmatpush1.bf16.msra.mxu0 0
    %346 = vmatprep.mubr.bf16.mxu0 0
    %347 = vmatmul.mubr.bf16.gmra.mrb[0].mxu0 %v308
    %v348 = vpop.f32.mrb[0].mxu0
    %v349 = vadd.f32 %v299, %v348
    %v350 = vpop.f32.mrb[0].mxu0
    %v351 = vpop.f32.mrb[0].mxu0
    %v352 = vpop.f32.mrb[0].mxu0
    %353 = vdwg.mxu0
    %v354 = vsub.f32 0.0, %v349
    %v355 = vmul.f32 %v354, 1.442695
    %v356 = vpow.pop %v355
    %v357 = vadd.f32 %v356, 1.0
    %v358 = vrcp.pop %v357
    %v359 = vpack.c.bf16 %v358, %v358
    %v360 = vld [vmem:[%s7] sm:$0xff]
    %v361 = vld [vmem:[%s7 + $0x8] sm:$0xff]
    %v362 = vld [vmem:[%s7 + $0x10] sm:$0x33]
    %v363 = vld [vmem:[%s8] sm:$0x3]
    %v365 = vlaneseq
    %v366 = vshrl.u32 %v365, 7
    %v367 = vsub.s32 0, %v366
    %v368 = vrot.slane %v363, %v367
    %v369 = vlaneseq
    %v370 = vshrl.u32 %v369, 7
    %v371 = vsub.s32 1, %v370
    %v372 = vrot.slane %v363, %v371
    %v378 = vunpack.c.l.b16 %v360
    %v379 = vunpack.c.h.b16 %v360
    %v380 = vunpack.c.l.b16 %v361
    %v381 = vunpack.c.h.b16 %v361
    %v382 = vunpack.c.l.b16 %v362
    %v383 = vunpack.c.h.b16 %v362
    %v384 = vpack.c.b16 %v380, %v378
    %v385 = vpack.c.b16 %v381, %v379
    %v386 = vpack.c.b16 %v382, %v382
    %v387 = vpack.c.b16 %v383, %v383
    %v391 = vsel %vm238, %v359, 0
    %v394 = vsel %vm242, %v386, 0
    %v397 = vsel %vm242, %v387, 0
    %399 = vmatprep.subr.bf16.mxu0 %v385
    %400 = vmatpush1.bf16.msra.mxu0 %v384
    %401 = vmatprep.subr.bf16.mxu0 %v397
    %402 = vmatpush1.bf16.msra.mxu0 %v394
    %403 = vmatprep.subr.bf16.mxu0 0
    %404 = vmatpush1.bf16.msra.mxu0 0
    %405 = vmatprep.subr.bf16.mxu0 0
    %406 = vmatpush1.bf16.msra.mxu0 0
    %407 = vmatprep.subr.bf16.mxu0 0
    %408 = vmatpush1.bf16.msra.mxu0 0
    %409 = vmatprep.subr.bf16.mxu0 0
    %410 = vmatpush1.bf16.msra.mxu0 0
    %411 = vmatprep.subr.bf16.mxu0 0
    %412 = vmatpush1.bf16.msra.mxu0 0
    %413 = vmatprep.subr.bf16.mxu0 0
    %414 = vmatpush1.bf16.msra.mxu0 0
    %415 = vmatprep.subr.bf16.mxu0 0
    %416 = vmatpush1.bf16.msra.mxu0 0
    %417 = vmatprep.subr.bf16.mxu0 0
    %418 = vmatpush1.bf16.msra.mxu0 0
    %419 = vmatprep.subr.bf16.mxu0 0
    %420 = vmatpush1.bf16.msra.mxu0 0
    %421 = vmatprep.subr.bf16.mxu0 0
    %422 = vmatpush1.bf16.msra.mxu0 0
    %423 = vmatprep.subr.bf16.mxu0 0
    %424 = vmatpush1.bf16.msra.mxu0 0
    %425 = vmatprep.subr.bf16.mxu0 0
    %426 = vmatpush1.bf16.msra.mxu0 0
    %427 = vmatprep.subr.bf16.mxu0 0
    %428 = vmatpush1.bf16.msra.mxu0 0
    %429 = vmatprep.subr.bf16.mxu0 0
    %430 = vmatpush1.bf16.msra.mxu0 0
    %431 = vmatprep.mubr.bf16.mxu0 0
    %432 = vmatmul.mubr.bf16.gmra.mrb[0].mxu0 %v391
    %v433 = vpop.f32.mrb[0].mxu0
    %v434 = vadd.f32 %v368, %v433
    %v435 = vpop.f32.mrb[0].mxu0
    %v436 = vadd.f32 %v372, %v435
    %v437 = vpop.f32.mrb[0].mxu0
    %v438 = vpop.f32.mrb[0].mxu0
    %439 = vdwg.mxu0
    %440 = vst [vmem:[#allocation2] sm:$0xff] %v434
    %441 = vst [vmem:[#allocation2 + $0x8] sm:$0xff] %v436
    // Predicated region
    $region38: #{sae_forward.1} parent=1 // pred_check
      _
    $region39: #{sae_forward.1} parent=1 // pred_check_branch
      %443 = sbr.rel (0) target = $region41
    $region40: #{sae_forward.1} parent=1 // pred_region
      %s445 = ssub.s32 256, 256
      %446 = vsyncadd [#allocation3], %s445
      %s448 = sshll.u32 [#allocation2], 4
      %s449 = int_to_ptr.vmem [resolvable:$true] %s448
      %451 = dma.vmem_to_hbm [thread:$0]  %s449, 256, %s9, [#allocation3]
    $region41: #{sae_forward.1} parent=1 // pred_fallthru
      _
    // Predicated region
    $region42: #{sae_forward.1} parent=1 // pred_check
      _
    $region43: #{sae_forward.1} parent=1 // pred_check_branch
      %453 = sbr.rel (0) target = $region45
    $region44: #{sae_forward.1} parent=1 // pred_region
      %454 = dma.done [#allocation3], 256
    $region45: #{sae_forward.1} parent=1 // pred_fallthru
      _
    %455 = vsyncpa [#allocation3], 1

</llo_original>
